<compile_context>
chip_gen: v7x
topology: tpu7x:2x2x1
jax: 0.10.0
libtpu: 0.0.40
codegen_flags: <defaults>
</compile_context>

<pallas_src>
import functools

import jax
import jax.numpy as jnp
from jax.experimental import pallas as pl
from jax.experimental.pallas import tpu as pltpu


def _round_up(n, m):
    return ((n + m - 1) // m) * m


def _mlp_kernel(x_ref, w1_ref, b1_ref, w2_ref, b2_ref, w3_ref, b3_ref, o_ref):
    # Cast the f32 batch tile to bf16 in VMEM (VPU; hidden under the input DMA).
    x_bf = x_ref[...].astype(jnp.bfloat16)

    # Layer 1: (tb, in) @ (in, 128) on the MXU; bf16 operands, f32 accumulation.
    h1 = jnp.dot(x_bf, w1_ref[...], preferred_element_type=jnp.float32)
    h1 = jnp.maximum(h1 + b1_ref[...], 0.0)          # bias + ReLU in f32 (VPU)

    # Layer 2: (tb, 128) @ (128, 64)
    h2 = jnp.dot(h1.astype(jnp.bfloat16), w2_ref[...],
                 preferred_element_type=jnp.float32)
    h2 = jnp.maximum(h2 + b2_ref[...], 0.0)

    # Layer 3: (tb, 64) @ (64, emb_dim) -- unpadded output; the narrow masked
    # store is negligible vs. the DMA savings of not writing a 128-wide slab.
    out = jnp.dot(h2.astype(jnp.bfloat16), w3_ref[...],
                  preferred_element_type=jnp.float32) + b3_ref[...]
    o_ref[...] = out.astype(o_ref.dtype)


def _vmem_limit_bytes(tb, input_dim, emb_dim):
    # Double-buffered streamed tiles + (double-buffered) weights + intermediates,
    # with 2x headroom; clamped to [32 MiB, 64 MiB] so it never exceeds v7x
    # physical VMEM and never shrinks below the typical scoped default.
    x_tile = 2 * tb * input_dim * 4
    out_tile = 2 * tb * emb_dim * 4
    weights = 2 * ((input_dim * 128 + 128 * 64 + 64 * emb_dim) * 2
                   + (128 + 64 + emb_dim) * 4)
    interm = tb * (input_dim * 2 + 128 * (4 + 2) + 64 * (4 + 2) + emb_dim * 4)
    total = 2 * (x_tile + out_tile + weights + interm) + (2 << 20)
    return int(max(32 << 20, min(total, 64 << 20)))


@functools.partial(jax.jit, static_argnames=("block_b",))
def label_embedding_mlp(x, params, block_b=2048):
    """x: (B, input_dim) float32.  params: prepared dict (w* bf16, b* f32 (1,n))."""
    B, input_dim = x.shape
    w1, b1 = params["w1"], params["b1"]
    w2, b2 = params["w2"], params["b2"]
    w3, b3 = params["w3"], params["b3"]
    emb_dim = w3.shape[1]

    # Batch tile: multiple of 8; clamp so the grid has >=2 steps (v7x has two
    # TensorCores and the "parallel" batch axis is what splits across them).
    tb = max(8, (block_b // 8) * 8)
    tb = min(tb, max(8, _round_up(pl.cdiv(B, 2), 8)))
    grid = (pl.cdiv(B, tb),)

    # Batch is tiled across the grid; weights/biases are tiny, grid-invariant
    # (constant index_map -> DMA'd once, not per step).
    in_specs = [
        pl.BlockSpec((tb, input_dim), lambda i: (i, 0)),        # x tile (f32)
        pl.BlockSpec(w1.shape, lambda i: (0, 0)),               # w1 (bf16, full)
        pl.BlockSpec(b1.shape, lambda i: (0, 0)),               # b1 (1, 128) f32
        pl.BlockSpec(w2.shape, lambda i: (0, 0)),               # w2 (bf16, full)
        pl.BlockSpec(b2.shape, lambda i: (0, 0)),               # b2 (1, 64) f32
        pl.BlockSpec(w3.shape, lambda i: (0, 0)),               # w3 (bf16, full)
        pl.BlockSpec(b3.shape, lambda i: (0, 0)),               # b3 (1, emb_dim) f32
    ]
    out_specs = pl.BlockSpec((tb, emb_dim), lambda i: (i, 0))   # unpadded output

    flops = 2 * B * (input_dim * 128 + 128 * 64 + 64 * emb_dim)
    bytes_accessed = (
        B * input_dim * 4                                   # x (f32, read once)
        + (input_dim * 128 + 128 * 64 + 64 * emb_dim) * 2   # weights (bf16)
        + (128 + 64 + emb_dim) * 4                          # biases (f32)
        + B * emb_dim * 4                                   # output (f32)
    )

    return pl.pallas_call(
        _mlp_kernel,
        out_shape=jax.ShapeDtypeStruct((B, emb_dim), jnp.float32),
        grid_spec=pltpu.PrefetchScalarGridSpec(
            num_scalar_prefetch=0,
            grid=grid,
            in_specs=in_specs,
            out_specs=out_specs,
        ),
        compiler_params=pltpu.CompilerParams(
            dimension_semantics=("parallel",),
            vmem_limit_bytes=_vmem_limit_bytes(tb, input_dim, emb_dim),
        ),
        cost_estimate=pl.CostEstimate(
            flops=flops, transcendentals=0, bytes_accessed=bytes_accessed),
    )(x, w1, b1, w2, b2, w3, b3)


def init_params(key, input_dim, embedding_dim):
    """Deterministic init mimicking nn.Linear's uniform(-1/sqrt(fan_in), 1/sqrt(fan_in))."""
    dims = [(input_dim, 128), (128, 64), (64, embedding_dim)]
    params = {}
    for idx, (fan_in, fan_out) in enumerate(dims, start=1):
        key, kw, kb = jax.random.split(key, 3)
        bound = 1.0 / jnp.sqrt(float(fan_in))
        params[f"w{idx}"] = jax.random.uniform(
            kw, (fan_in, fan_out), jnp.float32, -bound, bound)
        # Biases kept 2-D (1, fan_out) so they broadcast over sublanes in VMEM.
        params[f"b{idx}"] = jax.random.uniform(
            kb, (1, fan_out), jnp.float32, -bound, bound)
    return params


def prepare_params(params):
    """One-time conversion: weights -> bf16 (HBM traffic / MXU-native), biases stay f32.

    Done once outside the per-call jit so the casts are not re-emitted every call.
    """
    return {
        "w1": params["w1"].astype(jnp.bfloat16), "b1": params["b1"],
        "w2": params["w2"].astype(jnp.bfloat16), "b2": params["b2"],
        "w3": params["w3"].astype(jnp.bfloat16), "b3": params["b3"],
    }


def reference_mlp_f32(x, params):
    h1 = jnp.maximum(x @ params["w1"] + params["b1"], 0.0)
    h2 = jnp.maximum(h1 @ params["w2"] + params["b2"], 0.0)
    return h2 @ params["w3"] + params["b3"]


def reference_mlp_bf16(x, params):
    # Matches the kernel's operand precision (bf16 operands, f32 accumulation).
    f32 = lambda a: a.astype(jnp.bfloat16).astype(jnp.float32)
    h1 = jnp.maximum(f32(x) @ f32(params["w1"]) + params["b1"], 0.0)
    h2 = jnp.maximum(f32(h1) @ f32(params["w2"]) + params["b2"], 0.0)
    return f32(h2) @ f32(params["w3"]) + params["b3"]


if __name__ == "__main__":
    key = jax.random.PRNGKey(0)
    B, input_dim, embedding_dim = 64, 32, 16

    key, kx = jax.random.split(key)
    x = jax.random.normal(kx, (B, input_dim), dtype=jnp.float32)
    params = init_params(key, input_dim, embedding_dim)
    kernel_params = prepare_params(params)   # one-time bf16 weight conversion

    # With B=64 the tb clamp guarantees >=2 grid steps, so the "parallel" batch
    # axis can be split across both v7x TensorCores (harmless on v5e/v6e).
    out = label_embedding_mlp(x, kernel_params)
    out = jax.block_until_ready(out)

    assert out.shape == (B, embedding_dim)
    # Tight check vs a reference with identical operand precision.
    assert jnp.allclose(out, reference_mlp_bf16(x, params), atol=1e-3, rtol=1e-3), \
        "mismatch vs bf16-operand reference"
    # Loose check vs the full-f32 PyTorch-equivalent reference.
    assert jnp.allclose(out, reference_mlp_f32(x, params), atol=5e-2, rtol=5e-2), \
        "mismatch vs f32 reference"

    print("KERNEL_OK")
</pallas_src>

<mosaic_0001>
module attributes {stable_mosaic.version = 11 : i64} {
  func.func @_mlp_kernel(%arg0: i32, %arg1: memref<32x32xf32, #tpu.memory_space<vmem>>, %arg2: memref<32x128xbf16, #tpu.memory_space<vmem>>, %arg3: memref<1x128xf32, #tpu.memory_space<vmem>>, %arg4: memref<128x64xbf16, #tpu.memory_space<vmem>>, %arg5: memref<1x64xf32, #tpu.memory_space<vmem>>, %arg6: memref<64x16xbf16, #tpu.memory_space<vmem>>, %arg7: memref<1x16xf32, #tpu.memory_space<vmem>>, %arg8: memref<32x16xf32, #tpu.memory_space<vmem>>) attributes {dimension_semantics = [#tpu.dimension_semantics<parallel>], iteration_bounds = array<i64: 2>, scalar_prefetch = 0 : i64, scratch_operands = 0 : i64, tpu.core_type = #tpu.core_type<tc>, window_params = [{transform_indices = @transform_0, window_bounds = array<i64: 32, 32>}, {pipeline_mode = #tpu.pipeline_mode<synchronous>, transform_indices = @transform_1, window_bounds = array<i64: 32, 128>}, {pipeline_mode = #tpu.pipeline_mode<synchronous>, transform_indices = @transform_2, window_bounds = array<i64: 1, 128>}, {pipeline_mode = #tpu.pipeline_mode<synchronous>, transform_indices = @transform_3, window_bounds = array<i64: 128, 64>}, {pipeline_mode = #tpu.pipeline_mode<synchronous>, transform_indices = @transform_4, window_bounds = array<i64: 1, 64>}, {pipeline_mode = #tpu.pipeline_mode<synchronous>, transform_indices = @transform_5, window_bounds = array<i64: 64, 16>}, {pipeline_mode = #tpu.pipeline_mode<synchronous>, transform_indices = @transform_6, window_bounds = array<i64: 1, 16>}, {transform_indices = @transform_7, window_bounds = array<i64: 32, 16>}]} {
    %c0 = arith.constant 0 : index
    %c0_0 = arith.constant 0 : index
    %0 = vector.load %arg1[%c0, %c0_0] : memref<32x32xf32, #tpu.memory_space<vmem>>, vector<32x32xf32>
    %1 = arith.truncf %0 : vector<32x32xf32> to vector<32x32xbf16>
    %c0_1 = arith.constant 0 : index
    %c0_2 = arith.constant 0 : index
    %2 = vector.load %arg2[%c0_1, %c0_2] : memref<32x128xbf16, #tpu.memory_space<vmem>>, vector<32x128xbf16>
    %cst = arith.constant dense<0.000000e+00> : vector<32x128xf32>
    %3 = tpu.matmul %1, %2, %cst {dimension_numbers = #tpu.dot_dimension_numbers<[1], [0], [0], [1], [0, 0, 1, 1], [], []>} : vector<32x32xbf16>, vector<32x128xbf16>, vector<32x128xf32> -> vector<32x128xf32>
    %c0_3 = arith.constant 0 : index
    %c0_4 = arith.constant 0 : index
    %4 = vector.load %arg3[%c0_3, %c0_4] : memref<1x128xf32, #tpu.memory_space<vmem>>, vector<1x128xf32>
    %5 = vector.broadcast %4 : vector<1x128xf32> to vector<32x128xf32>
    %6 = arith.addf %3, %5 : vector<32x128xf32>
    %cst_5 = arith.constant 0.000000e+00 : f32
    %7 = vector.broadcast %cst_5 : f32 to vector<32x128xf32>
    %8 = arith.maximumf %6, %7 : vector<32x128xf32>
    %9 = arith.truncf %8 : vector<32x128xf32> to vector<32x128xbf16>
    %c0_6 = arith.constant 0 : index
    %c0_7 = arith.constant 0 : index
    %10 = vector.load %arg4[%c0_6, %c0_7] : memref<128x64xbf16, #tpu.memory_space<vmem>>, vector<128x64xbf16>
    %cst_8 = arith.constant dense<0.000000e+00> : vector<32x64xf32>
    %11 = tpu.matmul %9, %10, %cst_8 {dimension_numbers = #tpu.dot_dimension_numbers<[1], [0], [0], [1], [0, 0, 1, 1], [], []>} : vector<32x128xbf16>, vector<128x64xbf16>, vector<32x64xf32> -> vector<32x64xf32>
    %c0_9 = arith.constant 0 : index
    %c0_10 = arith.constant 0 : index
    %12 = vector.load %arg5[%c0_9, %c0_10] : memref<1x64xf32, #tpu.memory_space<vmem>>, vector<1x64xf32>
    %13 = vector.broadcast %12 : vector<1x64xf32> to vector<32x64xf32>
    %14 = arith.addf %11, %13 : vector<32x64xf32>
    %cst_11 = arith.constant 0.000000e+00 : f32
    %15 = vector.broadcast %cst_11 : f32 to vector<32x64xf32>
    %16 = arith.maximumf %14, %15 : vector<32x64xf32>
    %17 = arith.truncf %16 : vector<32x64xf32> to vector<32x64xbf16>
    %c0_12 = arith.constant 0 : index
    %c0_13 = arith.constant 0 : index
    %18 = vector.load %arg6[%c0_12, %c0_13] : memref<64x16xbf16, #tpu.memory_space<vmem>>, vector<64x16xbf16>
    %cst_14 = arith.constant dense<0.000000e+00> : vector<32x16xf32>
    %19 = tpu.matmul %17, %18, %cst_14 {dimension_numbers = #tpu.dot_dimension_numbers<[1], [0], [0], [1], [0, 0, 1, 1], [], []>} : vector<32x64xbf16>, vector<64x16xbf16>, vector<32x16xf32> -> vector<32x16xf32>
    %c0_15 = arith.constant 0 : index
    %c0_16 = arith.constant 0 : index
    %20 = vector.load %arg7[%c0_15, %c0_16] : memref<1x16xf32, #tpu.memory_space<vmem>>, vector<1x16xf32>
    %21 = vector.broadcast %20 : vector<1x16xf32> to vector<32x16xf32>
    %22 = arith.addf %19, %21 : vector<32x16xf32>
    %c0_17 = arith.constant 0 : index
    %c0_18 = arith.constant 0 : index
    %23 = vector.load %arg8[%c0_17, %c0_18] : memref<32x16xf32, #tpu.memory_space<vmem>>, vector<32x16xf32>
    tpu.vector_store %arg8[%c0_17, %c0_18], %22 {strides = array<i32>} : memref<32x16xf32, #tpu.memory_space<vmem>>, vector<32x16xf32>,
    return
  }
  func.func @transform_0(%arg0: i32) -> (i32, i32) {
    %c0_i32 = arith.constant 0 : i32
    %c0_i32_0 = arith.constant 0 : i32
    return %arg0, %c0_i32 : i32, i32
  }
  func.func @transform_1(%arg0: i32) -> (i32, i32) {
    %c0_i32 = arith.constant 0 : i32
    %c0_i32_0 = arith.constant 0 : i32
    %c0_i32_1 = arith.constant 0 : i32
    return %c0_i32, %c0_i32_0 : i32, i32
  }
  func.func @transform_2(%arg0: i32) -> (i32, i32) {
    %c0_i32 = arith.constant 0 : i32
    %c0_i32_0 = arith.constant 0 : i32
    %c0_i32_1 = arith.constant 0 : i32
    return %c0_i32, %c0_i32_0 : i32, i32
  }
  func.func @transform_3(%arg0: i32) -> (i32, i32) {
    %c0_i32 = arith.constant 0 : i32
    %c0_i32_0 = arith.constant 0 : i32
    %c0_i32_1 = arith.constant 0 : i32
    return %c0_i32, %c0_i32_0 : i32, i32
  }
  func.func @transform_4(%arg0: i32) -> (i32, i32) {
    %c0_i32 = arith.constant 0 : i32
    %c0_i32_0 = arith.constant 0 : i32
    %c0_i32_1 = arith.constant 0 : i32
    return %c0_i32, %c0_i32_0 : i32, i32
  }
  func.func @transform_5(%arg0: i32) -> (i32, i32) {
    %c0_i32 = arith.constant 0 : i32
    %c0_i32_0 = arith.constant 0 : i32
    %c0_i32_1 = arith.constant 0 : i32
    return %c0_i32, %c0_i32_0 : i32, i32
  }
  func.func @transform_6(%arg0: i32) -> (i32, i32) {
    %c0_i32 = arith.constant 0 : i32
    %c0_i32_0 = arith.constant 0 : i32
    %c0_i32_1 = arith.constant 0 : i32
    return %c0_i32, %c0_i32_0 : i32, i32
  }
  func.func @transform_7(%arg0: i32) -> (i32, i32) {
    %c0_i32 = arith.constant 0 : i32
    %c0_i32_0 = arith.constant 0 : i32
    return %arg0, %c0_i32 : i32, i32
  }
}

</mosaic_0001>

<llo_original>
// kernel: label_embedding_mlp.1
$region0: #{label_embedding_mlp.1}
  #allocation0 [shape = 'u32[]', space=smem, size = 0x4, offset = 0x4, fixed_abs, tag = 'smem constant byte address 0x4 - core index']
  #allocation1 [shape = 'u32[144,128]{1,0:T(1,128)}', space=vmem, size = 0x12000, scoped, tag = 'internal scratch']
  %s0 = inlined_call_operand.vmem [shape: f32[64,32], index: 0, kind: input, shape index: {}]
  %s1 = inlined_call_operand.vmem [shape: bf16[32,128], index: 1, kind: input, shape index: {}]
  %s2 = inlined_call_operand.vmem [shape: f32[1,128], index: 2, kind: input, shape index: {}]
  %s3 = inlined_call_operand.vmem [shape: bf16[128,64], index: 3, kind: input, shape index: {}]
  %s4 = inlined_call_operand.vmem [shape: f32[1,64], index: 4, kind: input, shape index: {}]
  %s5 = inlined_call_operand.vmem [shape: bf16[64,16], index: 5, kind: input, shape index: {}]
  %s6 = inlined_call_operand.vmem [shape: f32[1,16], index: 6, kind: input, shape index: {}]
  %s7 = inlined_call_operand.vmem [shape: f32[64,16], index: 7, kind: output, shape index: {}]
  %s8 = sld [smem:[#allocation0]]
  $region61: #{label_embedding_mlp.1} parent=0
    _
  %s10 = ssub.s32 1, %s8
  %s11 = scalar_select 0, %s10, %s8
  loop: start=0, step=1, limit=4
  $region2: #{label_embedding_mlp.1} parent=0 // loop_pre_header
    _
  $region3: #{label_embedding_mlp.1} parent=0 // loop_header
    %s13 = sphi 0, %s17
    %p14 = scmp.ge.s32.totalorder %s13, 4
    %s23 = sphi 0, %s25
    %s26 = sphi 0, %s23
    %s27 = sphi 0, %s26
    %s43 = sphi 0, %s27
    %s47 = sphi 0, %s47
    %s49 = sphi 0, %s47
    %s50 = sphi 0, %s49
    %s64 = sphi 0, %s50
    %s68 = sphi 0, %s68
    %s70 = sphi 0, %s68
    %s71 = sphi 0, %s70
    %s85 = sphi 0, %s71
    %s89 = sphi 0, %s89
    %s91 = sphi 0, %s89
    %s92 = sphi 0, %s91
    %s106 = sphi 0, %s92
    %s110 = sphi 0, %s110
    %s112 = sphi 0, %s110
    %s113 = sphi 0, %s112
    %s127 = sphi 0, %s113
    %s131 = sphi 0, %s131
    %s133 = sphi 0, %s131
    %s134 = sphi 0, %s133
    %s148 = sphi 0, %s134
    %s152 = sphi 0, %s152
    %s154 = sphi 0, %s152
    %s155 = sphi 0, %s154
    %s169 = sphi 0, %s155
    %s175 = sphi 0, %s177
    %s178 = sphi 0, %s175
    %s179 = sphi 0, %s178
    %s195 = sphi 0, %s179
  $region4: #{label_embedding_mlp.1} parent=0 // loop_header_branch
    %16 = sbr.rel (%p14) target = $region8
  $region5: #{label_embedding_mlp.1} parent=0 // loop_body
    %s18 = ssub.s32 %s13, 1
    %s19 = ssub.s32 %s13, 2
    %s20 = sadd.s32 %s13, 1
    %s21 = ssub.s32 %s13, %s20
    %p22 = scmp.eq.s32.totalorder %s21, 0
    %s24 = sadd.s32 %s23, 1
    %s25 = scalar_select %p22, %s23, %s24
    %p28 = pneg %p22
    %p29 = scmp.eq.s32.totalorder %s13, 1
    %p30 = por %p28, %p29
    %p31 = scmp.ne.s32.totalorder %s23, %s26
    %p32 = scmp.eq.s32.totalorder %s13, 0
    %p33 = por %p31, %p32
    %p34 = scmp.ne.s32.totalorder %s23, %s26
    %p35 = scmp.eq.s32.totalorder %s18, 1
    %p36 = por %p34, %p35
    %p37 = scmp.ne.s32.totalorder %s26, %s27
    %p38 = scmp.eq.s32.totalorder %s18, 0
    %p39 = por %p37, %p38
    %p40 = scmp.ne.s32.totalorder %s26, %s27
    %p41 = scmp.eq.s32.totalorder %s19, 1
    %p42 = por %p40, %p41
    %p44 = scmp.ne.s32.totalorder %s27, %s43
    %p45 = scmp.eq.s32.totalorder %s19, 0
    %p46 = por %p44, %p45
    %s48 = sadd.s32 %s47, 1
    %p51 = scmp.eq.s32.totalorder %s13, 1
    %p52 = scmp.ne.s32.totalorder %s47, %s49
    %p53 = scmp.eq.s32.totalorder %s13, 0
    %p54 = por %p52, %p53
    %p55 = scmp.ne.s32.totalorder %s47, %s49
    %p56 = scmp.eq.s32.totalorder %s18, 1
    %p57 = por %p55, %p56
    %p58 = scmp.ne.s32.totalorder %s49, %s50
    %p59 = scmp.eq.s32.totalorder %s18, 0
    %p60 = por %p58, %p59
    %p61 = scmp.ne.s32.totalorder %s49, %s50
    %p62 = scmp.eq.s32.totalorder %s19, 1
    %p63 = por %p61, %p62
    %p65 = scmp.ne.s32.totalorder %s50, %s64
    %p66 = scmp.eq.s32.totalorder %s19, 0
    %p67 = por %p65, %p66
    %s69 = sadd.s32 %s68, 1
    %p72 = scmp.eq.s32.totalorder %s13, 1
    %p73 = scmp.ne.s32.totalorder %s68, %s70
    %p74 = scmp.eq.s32.totalorder %s13, 0
    %p75 = por %p73, %p74
    %p76 = scmp.ne.s32.totalorder %s68, %s70
    %p77 = scmp.eq.s32.totalorder %s18, 1
    %p78 = por %p76, %p77
    %p79 = scmp.ne.s32.totalorder %s70, %s71
    %p80 = scmp.eq.s32.totalorder %s18, 0
    %p81 = por %p79, %p80
    %p82 = scmp.ne.s32.totalorder %s70, %s71
    %p83 = scmp.eq.s32.totalorder %s19, 1
    %p84 = por %p82, %p83
    %p86 = scmp.ne.s32.totalorder %s71, %s85
    %p87 = scmp.eq.s32.totalorder %s19, 0
    %p88 = por %p86, %p87
    %s90 = sadd.s32 %s89, 1
    %p93 = scmp.eq.s32.totalorder %s13, 1
    %p94 = scmp.ne.s32.totalorder %s89, %s91
    %p95 = scmp.eq.s32.totalorder %s13, 0
    %p96 = por %p94, %p95
    %p97 = scmp.ne.s32.totalorder %s89, %s91
    %p98 = scmp.eq.s32.totalorder %s18, 1
    %p99 = por %p97, %p98
    %p100 = scmp.ne.s32.totalorder %s91, %s92
    %p101 = scmp.eq.s32.totalorder %s18, 0
    %p102 = por %p100, %p101
    %p103 = scmp.ne.s32.totalorder %s91, %s92
    %p104 = scmp.eq.s32.totalorder %s19, 1
    %p105 = por %p103, %p104
    %p107 = scmp.ne.s32.totalorder %s92, %s106
    %p108 = scmp.eq.s32.totalorder %s19, 0
    %p109 = por %p107, %p108
    %s111 = sadd.s32 %s110, 1
    %p114 = scmp.eq.s32.totalorder %s13, 1
    %p115 = scmp.ne.s32.totalorder %s110, %s112
    %p116 = scmp.eq.s32.totalorder %s13, 0
    %p117 = por %p115, %p116
    %p118 = scmp.ne.s32.totalorder %s110, %s112
    %p119 = scmp.eq.s32.totalorder %s18, 1
    %p120 = por %p118, %p119
    %p121 = scmp.ne.s32.totalorder %s112, %s113
    %p122 = scmp.eq.s32.totalorder %s18, 0
    %p123 = por %p121, %p122
    %p124 = scmp.ne.s32.totalorder %s112, %s113
    %p125 = scmp.eq.s32.totalorder %s19, 1
    %p126 = por %p124, %p125
    %p128 = scmp.ne.s32.totalorder %s113, %s127
    %p129 = scmp.eq.s32.totalorder %s19, 0
    %p130 = por %p128, %p129
    %s132 = sadd.s32 %s131, 1
    %p135 = scmp.eq.s32.totalorder %s13, 1
    %p136 = scmp.ne.s32.totalorder %s131, %s133
    %p137 = scmp.eq.s32.totalorder %s13, 0
    %p138 = por %p136, %p137
    %p139 = scmp.ne.s32.totalorder %s131, %s133
    %p140 = scmp.eq.s32.totalorder %s18, 1
    %p141 = por %p139, %p140
    %p142 = scmp.ne.s32.totalorder %s133, %s134
    %p143 = scmp.eq.s32.totalorder %s18, 0
    %p144 = por %p142, %p143
    %p145 = scmp.ne.s32.totalorder %s133, %s134
    %p146 = scmp.eq.s32.totalorder %s19, 1
    %p147 = por %p145, %p146
    %p149 = scmp.ne.s32.totalorder %s134, %s148
    %p150 = scmp.eq.s32.totalorder %s19, 0
    %p151 = por %p149, %p150
    %s153 = sadd.s32 %s152, 1
    %p156 = scmp.eq.s32.totalorder %s13, 1
    %p157 = scmp.ne.s32.totalorder %s152, %s154
    %p158 = scmp.eq.s32.totalorder %s13, 0
    %p159 = por %p157, %p158
    %p160 = scmp.ne.s32.totalorder %s152, %s154
    %p161 = scmp.eq.s32.totalorder %s18, 1
    %p162 = por %p160, %p161
    %p163 = scmp.ne.s32.totalorder %s154, %s155
    %p164 = scmp.eq.s32.totalorder %s18, 0
    %p165 = por %p163, %p164
    %p166 = scmp.ne.s32.totalorder %s154, %s155
    %p167 = scmp.eq.s32.totalorder %s19, 1
    %p168 = por %p166, %p167
    %p170 = scmp.ne.s32.totalorder %s155, %s169
    %p171 = scmp.eq.s32.totalorder %s19, 0
    %p172 = por %p170, %p171
    %s173 = ssub.s32 %s13, %s20
    %p174 = scmp.eq.s32.totalorder %s173, 0
    %s176 = sadd.s32 %s175, 1
    %s177 = scalar_select %p174, %s175, %s176
    %p180 = pneg %p174
    %p181 = scmp.eq.s32.totalorder %s13, 1
    %p182 = por %p180, %p181
    %p183 = scmp.ne.s32.totalorder %s175, %s178
    %p184 = scmp.eq.s32.totalorder %s13, 0
    %p185 = por %p183, %p184
    %p186 = scmp.ne.s32.totalorder %s175, %s178
    %p187 = scmp.eq.s32.totalorder %s18, 1
    %p188 = por %p186, %p187
    %p189 = scmp.ne.s32.totalorder %s178, %s179
    %p190 = scmp.eq.s32.totalorder %s18, 0
    %p191 = por %p189, %p190
    %p192 = scmp.ne.s32.totalorder %s178, %s179
    %p193 = scmp.eq.s32.totalorder %s19, 1
    %p194 = por %p192, %p193
    %p196 = scmp.ne.s32.totalorder %s179, %s195
    %p197 = scmp.eq.s32.totalorder %s19, 0
    %p198 = por %p196, %p197
    %p199 = scmp.le.s32.totalorder 1, %s13
    %p200 = scmp.lt.s32.totalorder %s13, 3
    %p201 = pnand %p199, %p200
    %p202 = pneg %p201
    // Predicated region
    $region9: #{label_embedding_mlp.1} parent=5 // pred_check
      _
    $region10: #{label_embedding_mlp.1} parent=5 // pred_check_branch
      %204 = sbr.rel (%p201) target = $region12
    $region11: #{label_embedding_mlp.1} parent=5 // pred_region
      %s205 = ssub.s32 %s13, 1
      // Predicated region
      $region13: #{label_embedding_mlp.1} parent=11 // pred_check
        %p206 = pneg %p60
      $region14: #{label_embedding_mlp.1} parent=11 // pred_check_branch
        %208 = sbr.rel (%p206) target = $region16
      $region15: #{label_embedding_mlp.1} parent=11 // pred_region
        _
      $region16: #{label_embedding_mlp.1} parent=11 // pred_fallthru
        _
      // Predicated region
      $region17: #{label_embedding_mlp.1} parent=11 // pred_check
        %p209 = pneg %p81
      $region18: #{label_embedding_mlp.1} parent=11 // pred_check_branch
        %211 = sbr.rel (%p209) target = $region20
      $region19: #{label_embedding_mlp.1} parent=11 // pred_region
        _
      $region20: #{label_embedding_mlp.1} parent=11 // pred_fallthru
        _
      // Predicated region
      $region21: #{label_embedding_mlp.1} parent=11 // pred_check
        %p212 = pneg %p102
      $region22: #{label_embedding_mlp.1} parent=11 // pred_check_branch
        %214 = sbr.rel (%p212) target = $region24
      $region23: #{label_embedding_mlp.1} parent=11 // pred_region
        _
      $region24: #{label_embedding_mlp.1} parent=11 // pred_fallthru
        _
      // Predicated region
      $region25: #{label_embedding_mlp.1} parent=11 // pred_check
        %p215 = pneg %p123
      $region26: #{label_embedding_mlp.1} parent=11 // pred_check_branch
        %217 = sbr.rel (%p215) target = $region28
      $region27: #{label_embedding_mlp.1} parent=11 // pred_region
        _
      $region28: #{label_embedding_mlp.1} parent=11 // pred_fallthru
        _
      // Predicated region
      $region29: #{label_embedding_mlp.1} parent=11 // pred_check
        %p218 = pneg %p144
      $region30: #{label_embedding_mlp.1} parent=11 // pred_check_branch
        %220 = sbr.rel (%p218) target = $region32
      $region31: #{label_embedding_mlp.1} parent=11 // pred_region
        _
      $region32: #{label_embedding_mlp.1} parent=11 // pred_fallthru
        _
      // Predicated region
      $region33: #{label_embedding_mlp.1} parent=11 // pred_check
        %p221 = pneg %p165
      $region34: #{label_embedding_mlp.1} parent=11 // pred_check_branch
        %223 = sbr.rel (%p221) target = $region36
      $region35: #{label_embedding_mlp.1} parent=11 // pred_region
        _
      $region36: #{label_embedding_mlp.1} parent=11 // pred_fallthru
        _
    $region12: #{label_embedding_mlp.1} parent=5 // pred_fallthru
      _
    %p224 = scmp.lt.s32.totalorder %s13, 2
    // Predicated region
    $region37: #{label_embedding_mlp.1} parent=5 // pred_check
      %p225 = pneg %p224
    $region38: #{label_embedding_mlp.1} parent=5 // pred_check_branch
      %227 = sbr.rel (%p225) target = $region40
    $region39: #{label_embedding_mlp.1} parent=5 // pred_region
      // Predicated region
      $region41: #{label_embedding_mlp.1} parent=39 // pred_check
        %p228 = pneg %p33
      $region42: #{label_embedding_mlp.1} parent=39 // pred_check_branch
        %230 = sbr.rel (%p228) target = $region44
      $region43: #{label_embedding_mlp.1} parent=39 // pred_region
        %s231 = smul.u32 4, %s13
        %p232 = scmp.lt.s32.totalorder %s231, 7
        %s233 = scalar_select %p232, %s231, 7
        %s234 = smul.addr %s233, 8
        %s235 = scalar_lea.vmem %s0, %s234
        %s236 = smul.u32 4, %s13
      $region44: #{label_embedding_mlp.1} parent=39 // pred_fallthru
        _
    $region40: #{label_embedding_mlp.1} parent=5 // pred_fallthru
      _
    %p237 = scmp.le.s32.totalorder 1, %s13
    %p238 = scmp.lt.s32.totalorder %s13, 3
    %p239 = pnand %p237, %p238
    %p240 = pneg %p239
    // Predicated region
    $region45: #{label_embedding_mlp.1} parent=5 // pred_check
      _
    $region46: #{label_embedding_mlp.1} parent=5 // pred_check_branch
      %242 = sbr.rel (%p239) target = $region48
    $region47: #{label_embedding_mlp.1} parent=5 // pred_region
      %s243 = ssub.s32 %s13, 1
      %s244 = smul.u32 4, %s18
      %p245 = scmp.lt.s32.totalorder %s244, 7
      %s246 = scalar_select %p245, %s244, 7
      %s247 = smul.addr %s246, 8
      %s248 = scalar_lea.vmem %s0, %s247
      %p249 = pneg %p39
      %p250 = pneg %p36
      %p251 = pneg %p60
      %p252 = pneg %p57
      %p253 = pneg %p81
      %p254 = pneg %p78
      %p255 = pneg %p102
      %p256 = pneg %p99
      %p257 = pneg %p123
      %p258 = pneg %p120
      %p259 = pneg %p144
      %p260 = pneg %p141
      %p261 = pneg %p165
      %p262 = pneg %p162
      %p263 = pneg %p191
      %p264 = pneg %p188
      %s265 = smul.u32 4, %s18
      %p266 = scmp.lt.s32.totalorder %s265, 7
      %s267 = scalar_select %p266, %s265, 7
      %s268 = smul.addr %s267, 8
      %s269 = scalar_lea.vmem %s7, %s268
      %s270 = smul.u32 4, %s18
      %p271 = scmp.lt.s32.totalorder %s270, 7
      %s272 = scalar_select %p271, %s270, 7
      %s273 = smul.addr %s272, 8
      %s274 = scalar_lea.vmem %s0, %s273
      %s275 = smul.u32 4, %s18
      %s276 = smul.u32 4, %s18
      %p277 = scmp.lt.s32.totalorder %s276, 7
      %s278 = scalar_select %p277, %s276, 7
      %s279 = smul.addr %s278, 8
      %s280 = scalar_lea.vmem %s7, %s279
      %s281 = smul.u32 4, %s18
      %v283 = vld [vmem:[%s274] sm:$0xff]
      %v284 = vld [vmem:[%s274 + $0x8] sm:$0xff]
      %v285 = vld [vmem:[%s274 + $0x10] sm:$0xff]
      %v286 = vld [vmem:[%s274 + $0x18] sm:$0xff]
      %v287 = vpack.c.bf16 %v284, %v283
      %v288 = vpack.c.bf16 %v286, %v285
      %v289 = vld [vmem:[%s1] sm:$0xf]
      %v290 = vld [vmem:[%s1 + $0x4] sm:$0xf]
      %v291 = vld [vmem:[%s1 + $0x8] sm:$0xf]
      %v292 = vld [vmem:[%s1 + $0xc] sm:$0xf]
      %v293 = vld [vmem:[%s2] sm:$0x1]
      %v295 = vlaneseq
      %v296 = vshrl.u32 %v295, 7
      %v297 = vsub.s32 0, %v296
      %v298 = vrot.slane %v293, %v297
      %v304 = vunpack.c.l.b16 %v289
      %v305 = vunpack.c.l.b16 %v290
      %v306 = vunpack.c.l.b16 %v291
      %v307 = vunpack.c.l.b16 %v292
      %v308 = vpack.c.b16 %v305, %v304
      %v309 = vpack.c.b16 %v307, %v306
      %vm312 = vcmask 261120
      %v314 = vsel %vm312, %v287, 0
      %v317 = vsel %vm312, %v288, 0
      %319 = vmatprep.subr.bf16.mxu0 0
      %320 = vmatpush1.bf16.msra.mxu0 %v308
      %321 = vmatprep.subr.bf16.mxu0 0
      %322 = vmatpush1.bf16.msra.mxu0 %v309
      %323 = vmatprep.subr.bf16.mxu0 0
      %324 = vmatpush1.bf16.msra.mxu0 0
      %325 = vmatprep.subr.bf16.mxu0 0
      %326 = vmatpush1.bf16.msra.mxu0 0
      %327 = vmatprep.subr.bf16.mxu0 0
      %328 = vmatpush1.bf16.msra.mxu0 0
      %329 = vmatprep.subr.bf16.mxu0 0
      %330 = vmatpush1.bf16.msra.mxu0 0
      %331 = vmatprep.subr.bf16.mxu0 0
      %332 = vmatpush1.bf16.msra.mxu0 0
      %333 = vmatprep.subr.bf16.mxu0 0
      %334 = vmatpush1.bf16.msra.mxu0 0
      %335 = vmatprep.subr.bf16.mxu0 0
      %336 = vmatpush1.bf16.msra.mxu0 0
      %337 = vmatprep.subr.bf16.mxu0 0
      %338 = vmatpush1.bf16.msra.mxu0 0
      %339 = vmatprep.subr.bf16.mxu0 0
      %340 = vmatpush1.bf16.msra.mxu0 0
      %341 = vmatprep.subr.bf16.mxu0 0
      %342 = vmatpush1.bf16.msra.mxu0 0
      %343 = vmatprep.subr.bf16.mxu0 0
      %344 = vmatpush1.bf16.msra.mxu0 0
      %345 = vmatprep.subr.bf16.mxu0 0
      %346 = vmatpush1.bf16.msra.mxu0 0
      %347 = vmatprep.subr.bf16.mxu0 0
      %348 = vmatpush1.bf16.msra.mxu0 0
      %349 = vmatprep.subr.bf16.mxu0 0
      %350 = vmatpush1.bf16.msra.mxu0 0
      %351 = vmatprep.mubr.bf16.mxu0 0
      %352 = vmatmul.mubr.bf16.gmra.mrb[0].mxu0 %v314
      %v353 = vpop.f32.mrb[0].mxu0
      %v354 = vadd.f32 %v298, %v353
      %v355 = vpop.f32.mrb[0].mxu0
      %v356 = vpop.f32.mrb[0].mxu0
      %v357 = vadd.f32 %v298, %v356
      %v358 = vpop.f32.mrb[0].mxu0
      %359 = vmatprep.mubr.bf16.mxu0 0
      %360 = vmatmul.mubr.bf16.gmra.mrb[0].mxu0 %v317
      %v361 = vpop.f32.mrb[0].mxu0
      %v362 = vadd.f32 %v298, %v361
      %v363 = vpop.f32.mrb[0].mxu0
      %v364 = vpop.f32.mrb[0].mxu0
      %v365 = vadd.f32 %v298, %v364
      %v366 = vpop.f32.mrb[0].mxu0
      %367 = vdwg.mxu0
      %v368 = vmax.f32 %v354, 0.0
      %v369 = vmax.f32 %v357, 0.0
      %v370 = vmax.f32 %v362, 0.0
      %v371 = vmax.f32 %v365, 0.0
      %v372 = vpack.c.bf16 %v369, %v368
      %v373 = vpack.c.bf16 %v371, %v370
      %v374 = vld [vmem:[%s3] sm:$0xf]
      %v375 = vld [vmem:[%s3 + $0x4] sm:$0xf]
      %v376 = vld [vmem:[%s3 + $0x8] sm:$0xf]
      %v377 = vld [vmem:[%s3 + $0xc] sm:$0xf]
      %v378 = vld [vmem:[%s3 + $0x10] sm:$0xf]
      %v379 = vld [vmem:[%s3 + $0x14] sm:$0xf]
      %v380 = vld [vmem:[%s3 + $0x18] sm:$0xf]
      %v381 = vld [vmem:[%s3 + $0x1c] sm:$0xf]
      %v382 = vld [vmem:[%s3 + $0x20] sm:$0xf]
      %v383 = vld [vmem:[%s3 + $0x24] sm:$0xf]
      %v384 = vld [vmem:[%s3 + $0x28] sm:$0xf]
      %v385 = vld [vmem:[%s3 + $0x2c] sm:$0xf]
      %v386 = vld [vmem:[%s3 + $0x30] sm:$0xf]
      %v387 = vld [vmem:[%s3 + $0x34] sm:$0xf]
      %v388 = vld [vmem:[%s3 + $0x38] sm:$0xf]
      %v389 = vld [vmem:[%s3 + $0x3c] sm:$0xf]
      %v390 = vld [vmem:[%s4] sm:$0x1]
      %v392 = vlaneseq
      %v393 = vshrl.u32 %v392, 7
      %v394 = vsub.s32 0, %v393
      %v395 = vrot.slane %v390, %v394
      %v413 = vunpack.c.l.b16 %v374
      %v414 = vunpack.c.l.b16 %v375
      %v415 = vunpack.c.l.b16 %v376
      %v416 = vunpack.c.l.b16 %v377
      %v417 = vunpack.c.l.b16 %v378
      %v418 = vunpack.c.l.b16 %v379
      %v419 = vunpack.c.l.b16 %v380
      %v420 = vunpack.c.l.b16 %v381
      %v421 = vunpack.c.l.b16 %v382
      %v422 = vunpack.c.l.b16 %v383
      %v423 = vunpack.c.l.b16 %v384
      %v424 = vunpack.c.l.b16 %v385
      %v425 = vunpack.c.l.b16 %v386
      %v426 = vunpack.c.l.b16 %v387
      %v427 = vunpack.c.l.b16 %v388
      %v428 = vunpack.c.l.b16 %v389
      %v429 = vpack.c.b16 %v414, %v413
      %v430 = vpack.c.b16 %v416, %v415
      %v431 = vpack.c.b16 %v418, %v417
      %v432 = vpack.c.b16 %v420, %v419
      %v433 = vpack.c.b16 %v422, %v421
      %v434 = vpack.c.b16 %v424, %v423
      %v435 = vpack.c.b16 %v426, %v425
      %v436 = vpack.c.b16 %v428, %v427
      %445 = vmatprep.subr.bf16.mxu0 0
      %446 = vmatpush1.bf16.msra.mxu0 %v429
      %447 = vmatprep.subr.bf16.mxu0 0
      %448 = vmatpush1.bf16.msra.mxu0 %v430
      %449 = vmatprep.subr.bf16.mxu0 0
      %450 = vmatpush1.bf16.msra.mxu0 %v431
      %451 = vmatprep.subr.bf16.mxu0 0
      %452 = vmatpush1.bf16.msra.mxu0 %v432
      %453 = vmatprep.subr.bf16.mxu0 0
      %454 = vmatpush1.bf16.msra.mxu0 %v433
      %455 = vmatprep.subr.bf16.mxu0 0
      %456 = vmatpush1.bf16.msra.mxu0 %v434
      %457 = vmatprep.subr.bf16.mxu0 0
      %458 = vmatpush1.bf16.msra.mxu0 %v435
      %459 = vmatprep.subr.bf16.mxu0 0
      %460 = vmatpush1.bf16.msra.mxu0 %v436
      %461 = vmatprep.subr.bf16.mxu0 0
      %462 = vmatpush1.bf16.msra.mxu0 0
      %463 = vmatprep.subr.bf16.mxu0 0
      %464 = vmatpush1.bf16.msra.mxu0 0
      %465 = vmatprep.subr.bf16.mxu0 0
      %466 = vmatpush1.bf16.msra.mxu0 0
      %467 = vmatprep.subr.bf16.mxu0 0
      %468 = vmatpush1.bf16.msra.mxu0 0
      %469 = vmatprep.subr.bf16.mxu0 0
      %470 = vmatpush1.bf16.msra.mxu0 0
      %471 = vmatprep.subr.bf16.mxu0 0
      %472 = vmatpush1.bf16.msra.mxu0 0
      %473 = vmatprep.subr.bf16.mxu0 0
      %474 = vmatpush1.bf16.msra.mxu0 0
      %475 = vmatprep.subr.bf16.mxu0 0
      %476 = vmatpush1.bf16.msra.mxu0 0
      %477 = vmatprep.mubr.bf16.mxu0 0
      %478 = vmatmul.mubr.bf16.gmra.mrb[0].mxu0 %v372
      %v479 = vpop.f32.mrb[0].mxu0
      %v480 = vadd.f32 %v395, %v479
      %v481 = vpop.f32.mrb[0].mxu0
      %v482 = vpop.f32.mrb[0].mxu0
      %v483 = vadd.f32 %v395, %v482
      %v484 = vpop.f32.mrb[0].mxu0
      %485 = vmatprep.mubr.bf16.mxu0 0
      %486 = vmatmul.mubr.bf16.gmra.mrb[0].mxu0 %v373
      %v487 = vpop.f32.mrb[0].mxu0
      %v488 = vadd.f32 %v395, %v487
      %v489 = vpop.f32.mrb[0].mxu0
      %v490 = vpop.f32.mrb[0].mxu0
      %v491 = vadd.f32 %v395, %v490
      %v492 = vpop.f32.mrb[0].mxu0
      %493 = vdwg.mxu0
      %v494 = vmax.f32 %v480, 0.0
      %v495 = vmax.f32 %v483, 0.0
      %v496 = vmax.f32 %v488, 0.0
      %v497 = vmax.f32 %v491, 0.0
      %v498 = vpack.c.bf16 %v495, %v494
      %v499 = vpack.c.bf16 %v497, %v496
      %v500 = vld [vmem:[%s5] sm:$0xf]
      %v501 = vld [vmem:[%s5 + $0x4] sm:$0xf]
      %v502 = vld [vmem:[%s5 + $0x8] sm:$0xf]
      %v503 = vld [vmem:[%s5 + $0xc] sm:$0xf]
      %v504 = vld [vmem:[%s5 + $0x10] sm:$0xf]
      %v505 = vld [vmem:[%s5 + $0x14] sm:$0xf]
      %v506 = vld [vmem:[%s5 + $0x18] sm:$0xf]
      %v507 = vld [vmem:[%s5 + $0x1c] sm:$0xf]
      %v508 = vld [vmem:[%s6] sm:$0x1]
      %v510 = vlaneseq
      %v511 = vshrl.u32 %v510, 7
      %v512 = vsub.s32 0, %v511
      %v513 = vrot.slane %v508, %v512
      %v523 = vunpack.c.l.b16 %v500
      %v524 = vunpack.c.l.b16 %v501
      %v525 = vunpack.c.l.b16 %v502
      %v526 = vunpack.c.l.b16 %v503
      %v527 = vunpack.c.l.b16 %v504
      %v528 = vunpack.c.l.b16 %v505
      %v529 = vunpack.c.l.b16 %v506
      %v530 = vunpack.c.l.b16 %v507
      %v531 = vpack.c.b16 %v524, %v523
      %v532 = vpack.c.b16 %v526, %v525
      %v533 = vpack.c.b16 %v528, %v527
      %v534 = vpack.c.b16 %v530, %v529
      %vm539 = vcmask 523264
      %v541 = vsel %vm539, %v498, 0
      %v544 = vsel %vm539, %v499, 0
      %546 = vmatprep.subr.bf16.mxu0 0
      %547 = vmatpush1.bf16.msra.mxu0 %v531
      %548 = vmatprep.subr.bf16.mxu0 0
      %549 = vmatpush1.bf16.msra.mxu0 %v532
      %550 = vmatprep.subr.bf16.mxu0 0
      %551 = vmatpush1.bf16.msra.mxu0 %v533
      %552 = vmatprep.subr.bf16.mxu0 0
      %553 = vmatpush1.bf16.msra.mxu0 %v534
      %554 = vmatprep.subr.bf16.mxu0 0
      %555 = vmatpush1.bf16.msra.mxu0 0
      %556 = vmatprep.subr.bf16.mxu0 0
      %557 = vmatpush1.bf16.msra.mxu0 0
      %558 = vmatprep.subr.bf16.mxu0 0
      %559 = vmatpush1.bf16.msra.mxu0 0
      %560 = vmatprep.subr.bf16.mxu0 0
      %561 = vmatpush1.bf16.msra.mxu0 0
      %562 = vmatprep.subr.bf16.mxu0 0
      %563 = vmatpush1.bf16.msra.mxu0 0
      %564 = vmatprep.subr.bf16.mxu0 0
      %565 = vmatpush1.bf16.msra.mxu0 0
      %566 = vmatprep.subr.bf16.mxu0 0
      %567 = vmatpush1.bf16.msra.mxu0 0
      %568 = vmatprep.subr.bf16.mxu0 0
      %569 = vmatpush1.bf16.msra.mxu0 0
      %570 = vmatprep.subr.bf16.mxu0 0
      %571 = vmatpush1.bf16.msra.mxu0 0
      %572 = vmatprep.subr.bf16.mxu0 0
      %573 = vmatpush1.bf16.msra.mxu0 0
      %574 = vmatprep.subr.bf16.mxu0 0
      %575 = vmatpush1.bf16.msra.mxu0 0
      %576 = vmatprep.subr.bf16.mxu0 0
      %577 = vmatpush1.bf16.msra.mxu0 0
      %578 = vmatprep.mubr.bf16.mxu0 0
      %579 = vmatmul.mubr.bf16.gmra.mrb[0].mxu0 %v541
      %v580 = vpop.f32.mrb[0].mxu0
      %v581 = vadd.f32 %v513, %v580
      %v582 = vpop.f32.mrb[0].mxu0
      %v583 = vpop.f32.mrb[0].mxu0
      %v584 = vadd.f32 %v513, %v583
      %v585 = vpop.f32.mrb[0].mxu0
      %586 = vmatprep.mubr.bf16.mxu0 0
      %587 = vmatmul.mubr.bf16.gmra.mrb[0].mxu0 %v544
      %v588 = vpop.f32.mrb[0].mxu0
      %v589 = vadd.f32 %v513, %v588
      %v590 = vpop.f32.mrb[0].mxu0
      %v591 = vpop.f32.mrb[0].mxu0
      %v592 = vadd.f32 %v513, %v591
      %v593 = vpop.f32.mrb[0].mxu0
      %594 = vdwg.mxu0
      %vm595 = vcmask 130048
      %596 = vst.msk [vmem:[%s280] sm:$0xff] %vm595, %v581
      %597 = vst.msk [vmem:[%s280 + $0x8] sm:$0xff] %vm595, %v584
      %598 = vst.msk [vmem:[%s280 + $0x10] sm:$0xff] %vm595, %v589
      %599 = vst.msk [vmem:[%s280 + $0x18] sm:$0xff] %vm595, %v592
      %s600 = smul.u32 4, %s18
      %p601 = scmp.lt.s32.totalorder %s600, 7
      %s602 = scalar_select %p601, %s600, 7
      %s603 = smul.addr %s602, 8
      %s604 = scalar_lea.vmem %s7, %s603
      // Predicated region
      $region49: #{label_embedding_mlp.1} parent=47 // pred_check
        %p605 = pneg %p188
      $region50: #{label_embedding_mlp.1} parent=47 // pred_check_branch
        %607 = sbr.rel (%p605) target = $region52
      $region51: #{label_embedding_mlp.1} parent=47 // pred_region
        %s608 = smul.u32 4, %s18
      $region52: #{label_embedding_mlp.1} parent=47 // pred_fallthru
        _
    $region48: #{label_embedding_mlp.1} parent=5 // pred_fallthru
      _
    %p609 = scmp.le.s32.totalorder 2, %s13
    // Predicated region
    $region53: #{label_embedding_mlp.1} parent=5 // pred_check
      %p610 = pneg %p609
    $region54: #{label_embedding_mlp.1} parent=5 // pred_check_branch
      %612 = sbr.rel (%p610) target = $region56
    $region55: #{label_embedding_mlp.1} parent=5 // pred_region
      %s613 = ssub.s32 %s13, 2
      // Predicated region
      $region57: #{label_embedding_mlp.1} parent=55 // pred_check
        %p614 = pneg %p194
      $region58: #{label_embedding_mlp.1} parent=55 // pred_check_branch
        %616 = sbr.rel (%p614) target = $region60
      $region59: #{label_embedding_mlp.1} parent=55 // pred_region
        %s617 = smul.u32 4, %s19
        %p618 = scmp.lt.s32.totalorder %s617, 7
        %s619 = scalar_select %p618, %s617, 7
        %s620 = smul.addr %s619, 8
        %s621 = scalar_lea.vmem %s7, %s620
      $region60: #{label_embedding_mlp.1} parent=55 // pred_fallthru
        _
    $region56: #{label_embedding_mlp.1} parent=5 // pred_fallthru
      _
  $region6: #{label_embedding_mlp.1} parent=0 // loop_footer
    %s17 = sadd.s32 1, %s13
  $region7: #{label_embedding_mlp.1} parent=0 // loop_footer_branch
    %12 = sbr.rel target = $region3
  $region8: #{label_embedding_mlp.1} parent=0 // loop_exit
    _

</llo_original>
